<compile_context>
chip_gen: v6e
topology: v6e:2x2x1
jax: 0.10.0
libtpu: 0.0.40
codegen_flags: <defaults>
</compile_context>

<pallas_src>
import jax
import jax.numpy as jnp
from jax.experimental import pallas as pl
from jax.experimental.pallas import tpu as pltpu


_LANE = 128                 # TPU lane width
_F = 5                      # feature count fixed by the module (5x5 proj)
_GROUP = _F * _LANE         # 640 lanes = 128 pixels x 5 interleaved features
_NUM_SHIFTS = 2 * _F - 1    # 9 lane shifts cover all (i, j) feature pairs
_TM_MAX = 512               # rows per tile: 512*640*4 B = 1.31 MiB per block


def _round_up(x, m):
    return ((x + m - 1) // m) * m


def _cdiv(a, b):
    return (a + b - 1) // b


def _choose_tiling(n):
    """Pick (tile_rows, grid_steps) for an N-element batch.

    Goals (from the perf review):
      * >= ~1-2.6 MiB HBM traffic per grid step (amortize ~0.35us overhead)
      * tile derived from N, not a fixed max -> minimal tail padding
      * >= 2 grid steps for non-tiny inputs so ("parallel",) can use both
        v7x TensorCores
      * bounded VMEM (double-buffered blocks fit every generation)
    """
    r = _cdiv(n, _LANE)                 # rows of 640 lanes
    if r < 16:
        return r, 1                     # tiny input: one full-extent block
    steps = max(2, _cdiv(r, _TM_MAX))
    tm = _round_up(_cdiv(r, steps), 8)  # sublane-aligned tile
    steps = max(2, _cdiv(r, tm))
    return tm, steps


def _build_coefs(proj_matrix):
    """(9, 640) coefficient table for the shift-and-scale feature mix.

    coefs[k, q] = W[j + d, j], with j = q % 5, d = k - 4, and 0 where j + d
    falls outside [0, 5).  Then y[q] = sum_k x[q + d_k] * coefs[k, q] equals
    the interleaved (pixels @ W).
    """
    w = proj_matrix.astype(jnp.float32)
    q = jnp.arange(_GROUP)
    j = q % _F
    rows = []
    for k in range(_NUM_SHIFTS):
        d = k - (_F - 1)
        i = j + d
        valid = (i >= 0) & (i < _F)
        i_safe = jnp.clip(i, 0, _F - 1)
        rows.append(jnp.where(valid, w[i_safe, j], 0.0))
    return jnp.stack(rows)              # (9, 640) float32


def _gamut_kernel(coef_ref, x_ref, o_ref):
    """One (TM, 640) tile: 5-tap interleaved feature mix + sigmoid.

    coef_ref: (9, 640)  coefficient table, VMEM-resident (same block every step)
    x_ref:    (TM, 640) 128*TM pixels, features interleaved on the lane axis
    o_ref:    (TM, 640) output tile, same layout
    """
    x = x_ref[...]                                   # (TM, 640) f32
    c = coef_ref[...]                                # (9, 640)  f32
    y = x * c[_F - 1]                                # d = 0 tap, no roll
    for k in range(_NUM_SHIFTS):
        d = k - (_F - 1)
        if d == 0:
            continue
        # x_d[q] = x[(q + d) mod 640].  Lanes that wrap around the row only
        # land where the coefficient is 0, so the wrap never leaks between
        # pixels (the 5-feature groups never straddle the 640 boundary).
        x_d = pltpu.roll(x, shift=(-d) % _GROUP, axis=1)   # XLU, off the VALU
        y = y + x_d * c[k]                                 # VALU mul+add
    # sigmoid(y) = 0.5 * tanh(0.5 * y) + 0.5 : a single EUP push, no inf.
    o_ref[...] = (0.5 * jnp.tanh(0.5 * y) + 0.5).astype(o_ref.dtype)


def gamut_projection(x, proj_matrix):
    """sigmoid(x @ proj_matrix) via a lane-dense Pallas TPU kernel.

    x:            (N, 5) float32
    proj_matrix:  (5, 5) float32
    returns:      (N, 5) float32
    """
    n, f = x.shape
    assert f == _F and proj_matrix.shape == (_F, _F)

    tm, steps = _choose_tiling(n)
    r_pad = tm * steps
    n_pad = r_pad * _LANE

    xf = x
    if n_pad != n:
        # Cheap contiguous pad (only when N % tile != 0); padded pixels compute
        # sigmoid(0) = 0.5 and are sliced off below.
        xf = jnp.pad(xf, ((0, n_pad - n), (0, 0)))
    x_r = xf.reshape(r_pad, _GROUP)      # free reshape of a contiguous buffer

    coefs = _build_coefs(proj_matrix)    # (9, 640), ~23 KiB, VMEM-resident

    out_r = pl.pallas_call(
        _gamut_kernel,
        out_shape=jax.ShapeDtypeStruct((r_pad, _GROUP), x.dtype),
        grid=(steps,),
        in_specs=[
            pl.BlockSpec((_NUM_SHIFTS, _GROUP), lambda i: (0, 0)),  # coefs
            pl.BlockSpec((tm, _GROUP), lambda i: (i, 0)),           # x tile
        ],
        out_specs=pl.BlockSpec((tm, _GROUP), lambda i: (i, 0)),
        compiler_params=pltpu.CompilerParams(
            dimension_semantics=("parallel",),       # megacore over batch tiles
            vmem_limit_bytes=32 * 1024 * 1024,       # headroom (v5e default is 16 MiB)
        ),
        cost_estimate=pl.CostEstimate(
            flops=2 * _F * _F * n_pad,
            transcendentals=_F * n_pad,
            bytes_accessed=2 * _F * n_pad * 4 + _NUM_SHIFTS * _GROUP * 4,
        ),
    )(coefs, x_r)

    out = out_r.reshape(n_pad, _F)       # free reshape back to (N_pad, 5)
    return out[:n] if n_pad != n else out


if __name__ == "__main__":
    key = jax.random.PRNGKey(0)
    k_w, k_x = jax.random.split(key)

    # Module __init__ is eye(5); perturb slightly (deterministically) so the
    # 5x5 mix is actually exercised -- any parameter value is a valid forward.
    proj_matrix = jnp.eye(_F, dtype=jnp.float32) + 0.1 * jax.random.normal(
        k_w, (_F, _F), dtype=jnp.float32
    )

    fn = jax.jit(gamut_projection)

    # Small deterministic checks: single-block path, padded path, multi-step
    # grid path (2500 -> 2 grid steps, exercises the megacore-friendly tiling).
    for batch in (8, 333, 2500):
        x = jax.random.normal(
            jax.random.fold_in(k_x, batch), (batch, _F), dtype=jnp.float32
        )
        out = jax.block_until_ready(fn(x, proj_matrix))

        # Reference with exact (HIGHEST precision) matmul + exact sigmoid.
        ref = jax.nn.sigmoid(
            jnp.dot(x, proj_matrix, precision=jax.lax.Precision.HIGHEST)
        )
        assert out.shape == (batch, _F)
        err = float(jnp.max(jnp.abs(out - ref)))
        assert jnp.allclose(out, ref, atol=1e-4, rtol=1e-4), err

    print("KERNEL_OK")
</pallas_src>

<mosaic_0001>
module attributes {stable_mosaic.version = 11 : i64} {
  func.func @_gamut_kernel(%arg0: i32, %arg1: memref<9x640xf32, #tpu.memory_space<vmem>>, %arg2: memref<1x640xf32, #tpu.memory_space<vmem>>, %arg3: memref<1x640xf32, #tpu.memory_space<vmem>>) attributes {dimension_semantics = [#tpu.dimension_semantics<parallel>], iteration_bounds = array<i64: 1>, scalar_prefetch = 0 : i64, scratch_operands = 0 : i64, tpu.core_type = #tpu.core_type<tc>, window_params = [{pipeline_mode = #tpu.pipeline_mode<synchronous>, transform_indices = @transform_0, window_bounds = array<i64: 9, 640>}, {transform_indices = @transform_1, window_bounds = array<i64: 1, 640>}, {transform_indices = @transform_2, window_bounds = array<i64: 1, 640>}]} {
    %c0 = arith.constant 0 : index
    %c0_0 = arith.constant 0 : index
    %0 = vector.load %arg2[%c0, %c0_0] : memref<1x640xf32, #tpu.memory_space<vmem>>, vector<1x640xf32>
    %c0_1 = arith.constant 0 : index
    %c0_2 = arith.constant 0 : index
    %1 = vector.load %arg1[%c0_1, %c0_2] : memref<9x640xf32, #tpu.memory_space<vmem>>, vector<9x640xf32>
    %2 = vector.extract_strided_slice %1 {offsets = [4, 0], sizes = [1, 640], strides = [1, 1]} : vector<9x640xf32> to vector<1x640xf32>
    %3 = vector.shape_cast %2 : vector<1x640xf32> to vector<640xf32>
    %4 = vector.shape_cast %3 : vector<640xf32> to vector<1x640xf32>
    %5 = arith.mulf %0, %4 : vector<1x640xf32>
    %c4_i32 = arith.constant 4 : i32
    %6 = tpu.dynamic_rotate %0 by %c4_i32 dim 1 : vector<1x640xf32>, i32 -> vector<1x640xf32>
    %7 = vector.extract_strided_slice %1 {offsets = [0, 0], sizes = [1, 640], strides = [1, 1]} : vector<9x640xf32> to vector<1x640xf32>
    %8 = vector.shape_cast %7 : vector<1x640xf32> to vector<640xf32>
    %9 = vector.shape_cast %8 : vector<640xf32> to vector<1x640xf32>
    %10 = arith.mulf %6, %9 : vector<1x640xf32>
    %11 = arith.addf %5, %10 : vector<1x640xf32>
    %c3_i32 = arith.constant 3 : i32
    %12 = tpu.dynamic_rotate %0 by %c3_i32 dim 1 : vector<1x640xf32>, i32 -> vector<1x640xf32>
    %13 = vector.extract_strided_slice %1 {offsets = [1, 0], sizes = [1, 640], strides = [1, 1]} : vector<9x640xf32> to vector<1x640xf32>
    %14 = vector.shape_cast %13 : vector<1x640xf32> to vector<640xf32>
    %15 = vector.shape_cast %14 : vector<640xf32> to vector<1x640xf32>
    %16 = arith.mulf %12, %15 : vector<1x640xf32>
    %17 = arith.addf %11, %16 : vector<1x640xf32>
    %c2_i32 = arith.constant 2 : i32
    %18 = tpu.dynamic_rotate %0 by %c2_i32 dim 1 : vector<1x640xf32>, i32 -> vector<1x640xf32>
    %19 = vector.extract_strided_slice %1 {offsets = [2, 0], sizes = [1, 640], strides = [1, 1]} : vector<9x640xf32> to vector<1x640xf32>
    %20 = vector.shape_cast %19 : vector<1x640xf32> to vector<640xf32>
    %21 = vector.shape_cast %20 : vector<640xf32> to vector<1x640xf32>
    %22 = arith.mulf %18, %21 : vector<1x640xf32>
    %23 = arith.addf %17, %22 : vector<1x640xf32>
    %c1_i32 = arith.constant 1 : i32
    %24 = tpu.dynamic_rotate %0 by %c1_i32 dim 1 : vector<1x640xf32>, i32 -> vector<1x640xf32>
    %25 = vector.extract_strided_slice %1 {offsets = [3, 0], sizes = [1, 640], strides = [1, 1]} : vector<9x640xf32> to vector<1x640xf32>
    %26 = vector.shape_cast %25 : vector<1x640xf32> to vector<640xf32>
    %27 = vector.shape_cast %26 : vector<640xf32> to vector<1x640xf32>
    %28 = arith.mulf %24, %27 : vector<1x640xf32>
    %29 = arith.addf %23, %28 : vector<1x640xf32>
    %c639_i32 = arith.constant 639 : i32
    %30 = tpu.dynamic_rotate %0 by %c639_i32 dim 1 : vector<1x640xf32>, i32 -> vector<1x640xf32>
    %31 = vector.extract_strided_slice %1 {offsets = [5, 0], sizes = [1, 640], strides = [1, 1]} : vector<9x640xf32> to vector<1x640xf32>
    %32 = vector.shape_cast %31 : vector<1x640xf32> to vector<640xf32>
    %33 = vector.shape_cast %32 : vector<640xf32> to vector<1x640xf32>
    %34 = arith.mulf %30, %33 : vector<1x640xf32>
    %35 = arith.addf %29, %34 : vector<1x640xf32>
    %c638_i32 = arith.constant 638 : i32
    %36 = tpu.dynamic_rotate %0 by %c638_i32 dim 1 : vector<1x640xf32>, i32 -> vector<1x640xf32>
    %37 = vector.extract_strided_slice %1 {offsets = [6, 0], sizes = [1, 640], strides = [1, 1]} : vector<9x640xf32> to vector<1x640xf32>
    %38 = vector.shape_cast %37 : vector<1x640xf32> to vector<640xf32>
    %39 = vector.shape_cast %38 : vector<640xf32> to vector<1x640xf32>
    %40 = arith.mulf %36, %39 : vector<1x640xf32>
    %41 = arith.addf %35, %40 : vector<1x640xf32>
    %c637_i32 = arith.constant 637 : i32
    %42 = tpu.dynamic_rotate %0 by %c637_i32 dim 1 : vector<1x640xf32>, i32 -> vector<1x640xf32>
    %43 = vector.extract_strided_slice %1 {offsets = [7, 0], sizes = [1, 640], strides = [1, 1]} : vector<9x640xf32> to vector<1x640xf32>
    %44 = vector.shape_cast %43 : vector<1x640xf32> to vector<640xf32>
    %45 = vector.shape_cast %44 : vector<640xf32> to vector<1x640xf32>
    %46 = arith.mulf %42, %45 : vector<1x640xf32>
    %47 = arith.addf %41, %46 : vector<1x640xf32>
    %c636_i32 = arith.constant 636 : i32
    %48 = tpu.dynamic_rotate %0 by %c636_i32 dim 1 : vector<1x640xf32>, i32 -> vector<1x640xf32>
    %49 = vector.extract_strided_slice %1 {offsets = [8, 0], sizes = [1, 640], strides = [1, 1]} : vector<9x640xf32> to vector<1x640xf32>
    %50 = vector.shape_cast %49 : vector<1x640xf32> to vector<640xf32>
    %51 = vector.shape_cast %50 : vector<640xf32> to vector<1x640xf32>
    %52 = arith.mulf %48, %51 : vector<1x640xf32>
    %53 = arith.addf %47, %52 : vector<1x640xf32>
    %cst = arith.constant 5.000000e-01 : f32
    %54 = vector.broadcast %cst : f32 to vector<1x640xf32>
    %55 = arith.mulf %54, %53 : vector<1x640xf32>
    %56 = math.tanh %55 : vector<1x640xf32>
    %cst_3 = arith.constant 5.000000e-01 : f32
    %57 = vector.broadcast %cst_3 : f32 to vector<1x640xf32>
    %58 = arith.mulf %57, %56 : vector<1x640xf32>
    %cst_4 = arith.constant 5.000000e-01 : f32
    %59 = vector.broadcast %cst_4 : f32 to vector<1x640xf32>
    %60 = arith.addf %58, %59 : vector<1x640xf32>
    %c0_5 = arith.constant 0 : index
    %c0_6 = arith.constant 0 : index
    %61 = vector.load %arg3[%c0_5, %c0_6] : memref<1x640xf32, #tpu.memory_space<vmem>>, vector<1x640xf32>
    tpu.vector_store %arg3[%c0_5, %c0_6], %60 {strides = array<i32>} : memref<1x640xf32, #tpu.memory_space<vmem>>, vector<1x640xf32>,
    return
  }
  func.func @transform_0(%arg0: i32) -> (i32, i32) {
    %c0_i32 = arith.constant 0 : i32
    %c0_i32_0 = arith.constant 0 : i32
    %c0_i32_1 = arith.constant 0 : i32
    return %c0_i32, %c0_i32_0 : i32, i32
  }
  func.func @transform_1(%arg0: i32) -> (i32, i32) {
    %c0_i32 = arith.constant 0 : i32
    %c0_i32_0 = arith.constant 0 : i32
    return %arg0, %c0_i32 : i32, i32
  }
  func.func @transform_2(%arg0: i32) -> (i32, i32) {
    %c0_i32 = arith.constant 0 : i32
    %c0_i32_0 = arith.constant 0 : i32
    return %arg0, %c0_i32 : i32, i32
  }
}

</mosaic_0001>

<llo_original>
// kernel: gamut_projection.1
$region0: #{gamut_projection.1}
  #allocation0 [shape = 'u32[]', space=smem, size = 0x4, offset = 0x4, fixed_abs, tag = 'smem constant byte address 0x4 - core index']
  #allocation1 [shape = 'u32[144,128]{1,0:T(1,128)}', space=vmem, size = 0x12000, scoped, tag = 'internal scratch']
  %s0 = inlined_call_operand.vmem [shape: f32[9,640], index: 0, kind: input, shape index: {}]
  %s1 = inlined_call_operand.vmem [shape: f32[1,640], index: 1, kind: input, shape index: {}]
  %s2 = inlined_call_operand.vmem [shape: f32[1,640], index: 2, kind: output, shape index: {}]
  %s3 = sld [smem:[#allocation0]]
  $region18: #{gamut_projection.1} parent=0
    _
  %s5 = ssub.s32 1, %s3
  %s6 = scalar_select 0, %s5, %s3
  // Predicated region
  $region2: #{gamut_projection.1} parent=0 // pred_check
    _
  $region3: #{gamut_projection.1} parent=0 // pred_check_branch
    %8 = sbr.rel (0) target = $region5
  $region4: #{gamut_projection.1} parent=0 // pred_region
    _
  $region5: #{gamut_projection.1} parent=0 // pred_fallthru
    _
  // Predicated region
  $region6: #{gamut_projection.1} parent=0 // pred_check
    _
  $region7: #{gamut_projection.1} parent=0 // pred_check_branch
    %10 = sbr.rel (0) target = $region9
  $region8: #{gamut_projection.1} parent=0 // pred_region
    _
  $region9: #{gamut_projection.1} parent=0 // pred_fallthru
    _
  %v11 = vld [vmem:[%s1] sm:$0x1f]
  %v12 = vld [vmem:[%s0] sm:$0xff]
  %v13 = vld [vmem:[%s0 + $0x8] sm:$0xff]
  %v14 = vld [vmem:[%s0 + $0x10] sm:$0xff]
  %v15 = vld [vmem:[%s0 + $0x18] sm:$0xff]
  %v16 = vld [vmem:[%s0 + $0x20] sm:$0xff]
  %v17 = vld [vmem:[%s0 + $0x28] sm:$0x1]
  %v18 = vld [vmem:[%s0 + $0x30] sm:$0x1]
  %v19 = vld [vmem:[%s0 + $0x38] sm:$0x1]
  %v20 = vld [vmem:[%s0 + $0x40] sm:$0x1]
  %v21 = vld [vmem:[%s0 + $0x48] sm:$0x1]
  %v27 = vcombine.high %v12, %v13
  %v28 = vcombine.high %v14, %v15
  %v29 = vcombine.high %v16, %v16
  %v31 = vunpack.c.l.s4 1966171168
  %v32 = vunpack.c.0.s8 %v31
  %v33 = vlaneseq
  %v34 = vshrl.u32 %v33, 7
  %v35 = vsub.s32 %v32, %v34
  %v36 = vrot.slane %v27, %v35
  %v38 = vunpack.c.l.s4 1966171168
  %v39 = vunpack.c.0.s8 %v38
  %v40 = vlaneseq
  %v41 = vshrl.u32 %v40, 7
  %v42 = vsub.s32 %v39, %v41
  %v43 = vrot.slane %v28, %v42
  %v45 = vunpack.c.l.s4 1966171168
  %v46 = vunpack.c.0.s8 %v45
  %v47 = vlaneseq
  %v48 = vshrl.u32 %v47, 7
  %v49 = vsub.s32 %v46, %v48
  %v50 = vrot.slane %v29, %v49
  %v51 = vcombine.low %v36, %v43
  %v53 = vunpack.c.l.s4 1966171168
  %v54 = vunpack.c.0.s8 %v53
  %v55 = vlaneseq
  %v56 = vshrl.u32 %v55, 7
  %v57 = vsub.s32 %v54, %v56
  %v58 = vrot.slane %v51, %v57
  %v60 = vunpack.c.l.s4 1966171168
  %v61 = vunpack.c.0.s8 %v60
  %v62 = vlaneseq
  %v63 = vshrl.u32 %v62, 7
  %v64 = vsub.s32 %v61, %v63
  %v65 = vrot.slane %v50, %v64
  %v66 = vcombine.low %v58, %v65
  %v68 = vmul.f32 %v11, %v66
  %v70 = vlaneseq
  %v71 = vshrl.u32 %v70, 7
  %v72 = vsub.s32 0, %v71
  %v73 = vrot.slane %v11, %v72
  %v74 = vlaneseq
  %v75 = vshrl.u32 %v74, 7
  %v76 = vsub.s32 1, %v75
  %v77 = vrot.slane %v11, %v76
  %v78 = vlaneseq
  %v79 = vshrl.u32 %v78, 7
  %v80 = vsub.s32 2, %v79
  %v81 = vrot.slane %v11, %v80
  %v82 = vlaneseq
  %v83 = vshrl.u32 %v82, 7
  %v84 = vsub.s32 3, %v83
  %v85 = vrot.slane %v11, %v84
  %v86 = vlaneseq
  %v87 = vshrl.u32 %v86, 7
  %v88 = vsub.s32 4, %v87
  %v89 = vrot.slane %v11, %v88
  %95 = vrot.lane.b32.xlu0 %v73, 4
  %v96 = vpop.permute.xlu0 %95
  %97 = vrot.lane.b32.xlu0 %v77, 4
  %v98 = vpop.permute.xlu0 %97
  %99 = vrot.lane.b32.xlu0 %v81, 4
  %v100 = vpop.permute.xlu0 %99
  %101 = vrot.lane.b32.xlu0 %v85, 4
  %v102 = vpop.permute.xlu0 %101
  %103 = vrot.lane.b32.xlu0 %v89, 4
  %v104 = vpop.permute.xlu0 %103
  %v105 = vlaneseq
  %v106 = vand.u32 %v105, 127
  %vm107 = vcmp.lt.s32.totalorder %v106, 4
  %v108 = vsel %vm107, %v102, %v104
  %v109 = vsel %vm107, %v100, %v102
  %v110 = vsel %vm107, %v98, %v100
  %v111 = vsel %vm107, %v96, %v98
  %v112 = vsel %vm107, %v104, %v96
  %v113 = vmul.f32 %v112, %v12
  %v114 = vmul.f32 %v111, %v13
  %v115 = vmul.f32 %v110, %v14
  %v116 = vmul.f32 %v109, %v15
  %v117 = vmul.f32 %v108, %v16
  %v123 = vcombine.low %v113, %v114
  %v124 = vcombine.low %v115, %v116
  %v126 = vunpack.c.l.s4 1966171168
  %v127 = vunpack.c.0.s8 %v126
  %v128 = vlaneseq
  %v129 = vshrl.u32 %v128, 7
  %v130 = vsub.s32 %v127, %v129
  %v131 = vrot.slane %v123, %v130
  %v133 = vunpack.c.l.s4 1966171168
  %v134 = vunpack.c.0.s8 %v133
  %v135 = vlaneseq
  %v136 = vshrl.u32 %v135, 7
  %v137 = vsub.s32 %v134, %v136
  %v138 = vrot.slane %v124, %v137
  %v140 = vunpack.c.l.s4 1966171168
  %v141 = vunpack.c.0.s8 %v140
  %v142 = vlaneseq
  %v143 = vshrl.u32 %v142, 7
  %v144 = vsub.s32 %v141, %v143
  %v145 = vrot.slane %v117, %v144
  %v146 = vcombine.low %v131, %v138
  %v148 = vunpack.c.l.s4 1966171168
  %v149 = vunpack.c.0.s8 %v148
  %v150 = vlaneseq
  %v151 = vshrl.u32 %v150, 7
  %v152 = vsub.s32 %v149, %v151
  %v153 = vrot.slane %v146, %v152
  %v155 = vunpack.c.l.s4 1966171168
  %v156 = vunpack.c.0.s8 %v155
  %v157 = vlaneseq
  %v158 = vshrl.u32 %v157, 7
  %v159 = vsub.s32 %v156, %v158
  %v160 = vrot.slane %v145, %v159
  %v161 = vcombine.low %v153, %v160
  %v163 = vadd.f32 %v68, %v161
  %164 = vrot.lane.b32.xlu0 %v73, 3
  %v165 = vpop.permute.xlu0 %164
  %166 = vrot.lane.b32.xlu0 %v77, 3
  %v167 = vpop.permute.xlu0 %166
  %168 = vrot.lane.b32.xlu0 %v81, 3
  %v169 = vpop.permute.xlu0 %168
  %170 = vrot.lane.b32.xlu0 %v85, 3
  %v171 = vpop.permute.xlu0 %170
  %172 = vrot.lane.b32.xlu0 %v89, 3
  %v173 = vpop.permute.xlu0 %172
  %vm174 = vcmp.lt.s32.totalorder %v106, 3
  %v175 = vsel %vm174, %v171, %v173
  %v176 = vsel %vm174, %v169, %v171
  %v177 = vsel %vm174, %v167, %v169
  %v178 = vsel %vm174, %v165, %v167
  %v179 = vsel %vm174, %v173, %v165
  %v180 = vrot.slane %v12, 1
  %v181 = vrot.slane %v13, 1
  %v182 = vrot.slane %v14, 1
  %v183 = vrot.slane %v15, 1
  %v184 = vrot.slane %v16, 1
  %v190 = vmul.f32 %v179, %v180
  %v191 = vmul.f32 %v178, %v181
  %v192 = vmul.f32 %v177, %v182
  %v193 = vmul.f32 %v176, %v183
  %v194 = vmul.f32 %v175, %v184
  %v200 = vcombine.low %v190, %v191
  %v201 = vcombine.low %v192, %v193
  %v203 = vunpack.c.l.s4 1966171168
  %v204 = vunpack.c.0.s8 %v203
  %v205 = vlaneseq
  %v206 = vshrl.u32 %v205, 7
  %v207 = vsub.s32 %v204, %v206
  %v208 = vrot.slane %v200, %v207
  %v210 = vunpack.c.l.s4 1966171168
  %v211 = vunpack.c.0.s8 %v210
  %v212 = vlaneseq
  %v213 = vshrl.u32 %v212, 7
  %v214 = vsub.s32 %v211, %v213
  %v215 = vrot.slane %v201, %v214
  %v217 = vunpack.c.l.s4 1966171168
  %v218 = vunpack.c.0.s8 %v217
  %v219 = vlaneseq
  %v220 = vshrl.u32 %v219, 7
  %v221 = vsub.s32 %v218, %v220
  %v222 = vrot.slane %v194, %v221
  %v223 = vcombine.low %v208, %v215
  %v225 = vunpack.c.l.s4 1966171168
  %v226 = vunpack.c.0.s8 %v225
  %v227 = vlaneseq
  %v228 = vshrl.u32 %v227, 7
  %v229 = vsub.s32 %v226, %v228
  %v230 = vrot.slane %v223, %v229
  %v232 = vunpack.c.l.s4 1966171168
  %v233 = vunpack.c.0.s8 %v232
  %v234 = vlaneseq
  %v235 = vshrl.u32 %v234, 7
  %v236 = vsub.s32 %v233, %v235
  %v237 = vrot.slane %v222, %v236
  %v238 = vcombine.low %v230, %v237
  %v240 = vadd.f32 %v163, %v238
  %241 = vrot.lane.b32.xlu0 %v73, 2
  %v242 = vpop.permute.xlu0 %241
  %243 = vrot.lane.b32.xlu0 %v77, 2
  %v244 = vpop.permute.xlu0 %243
  %245 = vrot.lane.b32.xlu0 %v81, 2
  %v246 = vpop.permute.xlu0 %245
  %247 = vrot.lane.b32.xlu0 %v85, 2
  %v248 = vpop.permute.xlu0 %247
  %249 = vrot.lane.b32.xlu0 %v89, 2
  %v250 = vpop.permute.xlu0 %249
  %vm251 = vcmp.lt.s32.totalorder %v106, 2
  %v252 = vsel %vm251, %v248, %v250
  %v253 = vsel %vm251, %v246, %v248
  %v254 = vsel %vm251, %v244, %v246
  %v255 = vsel %vm251, %v242, %v244
  %v256 = vsel %vm251, %v250, %v242
  %v257 = vrot.slane %v12, 2
  %v258 = vrot.slane %v13, 2
  %v259 = vrot.slane %v14, 2
  %v260 = vrot.slane %v15, 2
  %v261 = vrot.slane %v16, 2
  %v267 = vmul.f32 %v256, %v257
  %v268 = vmul.f32 %v255, %v258
  %v269 = vmul.f32 %v254, %v259
  %v270 = vmul.f32 %v253, %v260
  %v271 = vmul.f32 %v252, %v261
  %v277 = vcombine.low %v267, %v268
  %v278 = vcombine.low %v269, %v270
  %v280 = vunpack.c.l.s4 1966171168
  %v281 = vunpack.c.0.s8 %v280
  %v282 = vlaneseq
  %v283 = vshrl.u32 %v282, 7
  %v284 = vsub.s32 %v281, %v283
  %v285 = vrot.slane %v277, %v284
  %v287 = vunpack.c.l.s4 1966171168
  %v288 = vunpack.c.0.s8 %v287
  %v289 = vlaneseq
  %v290 = vshrl.u32 %v289, 7
  %v291 = vsub.s32 %v288, %v290
  %v292 = vrot.slane %v278, %v291
  %v294 = vunpack.c.l.s4 1966171168
  %v295 = vunpack.c.0.s8 %v294
  %v296 = vlaneseq
  %v297 = vshrl.u32 %v296, 7
  %v298 = vsub.s32 %v295, %v297
  %v299 = vrot.slane %v271, %v298
  %v300 = vcombine.low %v285, %v292
  %v302 = vunpack.c.l.s4 1966171168
  %v303 = vunpack.c.0.s8 %v302
  %v304 = vlaneseq
  %v305 = vshrl.u32 %v304, 7
  %v306 = vsub.s32 %v303, %v305
  %v307 = vrot.slane %v300, %v306
  %v309 = vunpack.c.l.s4 1966171168
  %v310 = vunpack.c.0.s8 %v309
  %v311 = vlaneseq
  %v312 = vshrl.u32 %v311, 7
  %v313 = vsub.s32 %v310, %v312
  %v314 = vrot.slane %v299, %v313
  %v315 = vcombine.low %v307, %v314
  %v317 = vadd.f32 %v240, %v315
  %318 = vrot.lane.b32.xlu0 %v73, 1
  %v319 = vpop.permute.xlu0 %318
  %320 = vrot.lane.b32.xlu0 %v77, 1
  %v321 = vpop.permute.xlu0 %320
  %322 = vrot.lane.b32.xlu0 %v81, 1
  %v323 = vpop.permute.xlu0 %322
  %324 = vrot.lane.b32.xlu0 %v85, 1
  %v325 = vpop.permute.xlu0 %324
  %326 = vrot.lane.b32.xlu0 %v89, 1
  %v327 = vpop.permute.xlu0 %326
  %vm328 = vcmp.lt.s32.totalorder %v106, 1
  %v329 = vsel %vm328, %v325, %v327
  %v330 = vsel %vm328, %v323, %v325
  %v331 = vsel %vm328, %v321, %v323
  %v332 = vsel %vm328, %v319, %v321
  %v333 = vsel %vm328, %v327, %v319
  %v334 = vrot.slane %v12, 3
  %v335 = vrot.slane %v13, 3
  %v336 = vrot.slane %v14, 3
  %v337 = vrot.slane %v15, 3
  %v338 = vrot.slane %v16, 3
  %v344 = vmul.f32 %v333, %v334
  %v345 = vmul.f32 %v332, %v335
  %v346 = vmul.f32 %v331, %v336
  %v347 = vmul.f32 %v330, %v337
  %v348 = vmul.f32 %v329, %v338
  %v354 = vcombine.low %v344, %v345
  %v355 = vcombine.low %v346, %v347
  %v357 = vunpack.c.l.s4 1966171168
  %v358 = vunpack.c.0.s8 %v357
  %v359 = vlaneseq
  %v360 = vshrl.u32 %v359, 7
  %v361 = vsub.s32 %v358, %v360
  %v362 = vrot.slane %v354, %v361
  %v364 = vunpack.c.l.s4 1966171168
  %v365 = vunpack.c.0.s8 %v364
  %v366 = vlaneseq
  %v367 = vshrl.u32 %v366, 7
  %v368 = vsub.s32 %v365, %v367
  %v369 = vrot.slane %v355, %v368
  %v371 = vunpack.c.l.s4 1966171168
  %v372 = vunpack.c.0.s8 %v371
  %v373 = vlaneseq
  %v374 = vshrl.u32 %v373, 7
  %v375 = vsub.s32 %v372, %v374
  %v376 = vrot.slane %v348, %v375
  %v377 = vcombine.low %v362, %v369
  %v379 = vunpack.c.l.s4 1966171168
  %v380 = vunpack.c.0.s8 %v379
  %v381 = vlaneseq
  %v382 = vshrl.u32 %v381, 7
  %v383 = vsub.s32 %v380, %v382
  %v384 = vrot.slane %v377, %v383
  %v386 = vunpack.c.l.s4 1966171168
  %v387 = vunpack.c.0.s8 %v386
  %v388 = vlaneseq
  %v389 = vshrl.u32 %v388, 7
  %v390 = vsub.s32 %v387, %v389
  %v391 = vrot.slane %v376, %v390
  %v392 = vcombine.low %v384, %v391
  %v394 = vadd.f32 %v317, %v392
  %395 = vrot.lane.b32.xlu0 %v73, 127
  %v396 = vpop.permute.xlu0 %395
  %397 = vrot.lane.b32.xlu0 %v77, 127
  %v398 = vpop.permute.xlu0 %397
  %399 = vrot.lane.b32.xlu0 %v81, 127
  %v400 = vpop.permute.xlu0 %399
  %401 = vrot.lane.b32.xlu0 %v85, 127
  %v402 = vpop.permute.xlu0 %401
  %403 = vrot.lane.b32.xlu0 %v89, 127
  %v404 = vpop.permute.xlu0 %403
  %vm405 = vcmp.lt.s32.totalorder %v106, 127
  %v406 = vsel %vm405, %v402, %v404
  %v407 = vsel %vm405, %v400, %v402
  %v408 = vsel %vm405, %v398, %v400
  %v409 = vsel %vm405, %v396, %v398
  %v410 = vsel %vm405, %v404, %v396
  %v411 = vrot.slane %v12, 5
  %v412 = vrot.slane %v13, 5
  %v413 = vrot.slane %v14, 5
  %v414 = vrot.slane %v15, 5
  %v415 = vrot.slane %v16, 5
  %v421 = vmul.f32 %v409, %v411
  %v422 = vmul.f32 %v408, %v412
  %v423 = vmul.f32 %v407, %v413
  %v424 = vmul.f32 %v406, %v414
  %v425 = vmul.f32 %v410, %v415
  %v431 = vcombine.low %v421, %v422
  %v432 = vcombine.low %v423, %v424
  %v434 = vunpack.c.l.s4 1966171168
  %v435 = vunpack.c.0.s8 %v434
  %v436 = vlaneseq
  %v437 = vshrl.u32 %v436, 7
  %v438 = vsub.s32 %v435, %v437
  %v439 = vrot.slane %v431, %v438
  %v441 = vunpack.c.l.s4 1966171168
  %v442 = vunpack.c.0.s8 %v441
  %v443 = vlaneseq
  %v444 = vshrl.u32 %v443, 7
  %v445 = vsub.s32 %v442, %v444
  %v446 = vrot.slane %v432, %v445
  %v448 = vunpack.c.l.s4 1966171168
  %v449 = vunpack.c.0.s8 %v448
  %v450 = vlaneseq
  %v451 = vshrl.u32 %v450, 7
  %v452 = vsub.s32 %v449, %v451
  %v453 = vrot.slane %v425, %v452
  %v454 = vcombine.low %v439, %v446
  %v456 = vunpack.c.l.s4 1966171168
  %v457 = vunpack.c.0.s8 %v456
  %v458 = vlaneseq
  %v459 = vshrl.u32 %v458, 7
  %v460 = vsub.s32 %v457, %v459
  %v461 = vrot.slane %v454, %v460
  %v463 = vunpack.c.l.s4 1966171168
  %v464 = vunpack.c.0.s8 %v463
  %v465 = vlaneseq
  %v466 = vshrl.u32 %v465, 7
  %v467 = vsub.s32 %v464, %v466
  %v468 = vrot.slane %v453, %v467
  %v469 = vcombine.low %v461, %v468
  %v471 = vadd.f32 %v394, %v469
  %472 = vrot.lane.b32.xlu0 %v73, 126
  %v473 = vpop.permute.xlu0 %472
  %474 = vrot.lane.b32.xlu0 %v77, 126
  %v475 = vpop.permute.xlu0 %474
  %476 = vrot.lane.b32.xlu0 %v81, 126
  %v477 = vpop.permute.xlu0 %476
  %478 = vrot.lane.b32.xlu0 %v85, 126
  %v479 = vpop.permute.xlu0 %478
  %480 = vrot.lane.b32.xlu0 %v89, 126
  %v481 = vpop.permute.xlu0 %480
  %vm482 = vcmp.lt.s32.totalorder %v106, 126
  %v483 = vsel %vm482, %v479, %v481
  %v484 = vsel %vm482, %v477, %v479
  %v485 = vsel %vm482, %v475, %v477
  %v486 = vsel %vm482, %v473, %v475
  %v487 = vsel %vm482, %v481, %v473
  %v488 = vrot.slane %v12, 6
  %v489 = vrot.slane %v13, 6
  %v490 = vrot.slane %v14, 6
  %v491 = vrot.slane %v15, 6
  %v492 = vrot.slane %v16, 6
  %v498 = vmul.f32 %v486, %v488
  %v499 = vmul.f32 %v485, %v489
  %v500 = vmul.f32 %v484, %v490
  %v501 = vmul.f32 %v483, %v491
  %v502 = vmul.f32 %v487, %v492
  %v508 = vcombine.low %v498, %v499
  %v509 = vcombine.low %v500, %v501
  %v511 = vunpack.c.l.s4 1966171168
  %v512 = vunpack.c.0.s8 %v511
  %v513 = vlaneseq
  %v514 = vshrl.u32 %v513, 7
  %v515 = vsub.s32 %v512, %v514
  %v516 = vrot.slane %v508, %v515
  %v518 = vunpack.c.l.s4 1966171168
  %v519 = vunpack.c.0.s8 %v518
  %v520 = vlaneseq
  %v521 = vshrl.u32 %v520, 7
  %v522 = vsub.s32 %v519, %v521
  %v523 = vrot.slane %v509, %v522
  %v525 = vunpack.c.l.s4 1966171168
  %v526 = vunpack.c.0.s8 %v525
  %v527 = vlaneseq
  %v528 = vshrl.u32 %v527, 7
  %v529 = vsub.s32 %v526, %v528
  %v530 = vrot.slane %v502, %v529
  %v531 = vcombine.low %v516, %v523
  %v533 = vunpack.c.l.s4 1966171168
  %v534 = vunpack.c.0.s8 %v533
  %v535 = vlaneseq
  %v536 = vshrl.u32 %v535, 7
  %v537 = vsub.s32 %v534, %v536
  %v538 = vrot.slane %v531, %v537
  %v540 = vunpack.c.l.s4 1966171168
  %v541 = vunpack.c.0.s8 %v540
  %v542 = vlaneseq
  %v543 = vshrl.u32 %v542, 7
  %v544 = vsub.s32 %v541, %v543
  %v545 = vrot.slane %v530, %v544
  %v546 = vcombine.low %v538, %v545
  %v548 = vadd.f32 %v471, %v546
  %549 = vrot.lane.b32.xlu0 %v73, 125
  %v550 = vpop.permute.xlu0 %549
  %551 = vrot.lane.b32.xlu0 %v77, 125
  %v552 = vpop.permute.xlu0 %551
  %553 = vrot.lane.b32.xlu0 %v81, 125
  %v554 = vpop.permute.xlu0 %553
  %555 = vrot.lane.b32.xlu0 %v85, 125
  %v556 = vpop.permute.xlu0 %555
  %557 = vrot.lane.b32.xlu0 %v89, 125
  %v558 = vpop.permute.xlu0 %557
  %vm559 = vcmp.lt.s32.totalorder %v106, 125
  %v560 = vsel %vm559, %v556, %v558
  %v561 = vsel %vm559, %v554, %v556
  %v562 = vsel %vm559, %v552, %v554
  %v563 = vsel %vm559, %v550, %v552
  %v564 = vsel %vm559, %v558, %v550
  %v565 = vrot.slane %v12, 7
  %v566 = vrot.slane %v13, 7
  %v567 = vrot.slane %v14, 7
  %v568 = vrot.slane %v15, 7
  %v569 = vrot.slane %v16, 7
  %v575 = vmul.f32 %v563, %v565
  %v576 = vmul.f32 %v562, %v566
  %v577 = vmul.f32 %v561, %v567
  %v578 = vmul.f32 %v560, %v568
  %v579 = vmul.f32 %v564, %v569
  %v585 = vcombine.low %v575, %v576
  %v586 = vcombine.low %v577, %v578
  %v588 = vunpack.c.l.s4 1966171168
  %v589 = vunpack.c.0.s8 %v588
  %v590 = vlaneseq
  %v591 = vshrl.u32 %v590, 7
  %v592 = vsub.s32 %v589, %v591
  %v593 = vrot.slane %v585, %v592
  %v595 = vunpack.c.l.s4 1966171168
  %v596 = vunpack.c.0.s8 %v595
  %v597 = vlaneseq
  %v598 = vshrl.u32 %v597, 7
  %v599 = vsub.s32 %v596, %v598
  %v600 = vrot.slane %v586, %v599
  %v602 = vunpack.c.l.s4 1966171168
  %v603 = vunpack.c.0.s8 %v602
  %v604 = vlaneseq
  %v605 = vshrl.u32 %v604, 7
  %v606 = vsub.s32 %v603, %v605
  %v607 = vrot.slane %v579, %v606
  %v608 = vcombine.low %v593, %v600
  %v610 = vunpack.c.l.s4 1966171168
  %v611 = vunpack.c.0.s8 %v610
  %v612 = vlaneseq
  %v613 = vshrl.u32 %v612, 7
  %v614 = vsub.s32 %v611, %v613
  %v615 = vrot.slane %v608, %v614
  %v617 = vunpack.c.l.s4 1966171168
  %v618 = vunpack.c.0.s8 %v617
  %v619 = vlaneseq
  %v620 = vshrl.u32 %v619, 7
  %v621 = vsub.s32 %v618, %v620
  %v622 = vrot.slane %v607, %v621
  %v623 = vcombine.low %v615, %v622
  %v625 = vadd.f32 %v548, %v623
  %626 = vrot.lane.b32.xlu0 %v73, 124
  %v627 = vpop.permute.xlu0 %626
  %628 = vrot.lane.b32.xlu0 %v77, 124
  %v629 = vpop.permute.xlu0 %628
  %630 = vrot.lane.b32.xlu0 %v81, 124
  %v631 = vpop.permute.xlu0 %630
  %632 = vrot.lane.b32.xlu0 %v85, 124
  %v633 = vpop.permute.xlu0 %632
  %634 = vrot.lane.b32.xlu0 %v89, 124
  %v635 = vpop.permute.xlu0 %634
  %vm636 = vcmp.lt.s32.totalorder %v106, 124
  %v637 = vsel %vm636, %v633, %v635
  %v638 = vsel %vm636, %v631, %v633
  %v639 = vsel %vm636, %v629, %v631
  %v640 = vsel %vm636, %v627, %v629
  %v641 = vsel %vm636, %v635, %v627
  %v642 = vmul.f32 %v640, %v17
  %v643 = vmul.f32 %v639, %v18
  %v644 = vmul.f32 %v638, %v19
  %v645 = vmul.f32 %v637, %v20
  %v646 = vmul.f32 %v641, %v21
  %v652 = vcombine.low %v642, %v643
  %v653 = vcombine.low %v644, %v645
  %v655 = vunpack.c.l.s4 1966171168
  %v656 = vunpack.c.0.s8 %v655
  %v657 = vlaneseq
  %v658 = vshrl.u32 %v657, 7
  %v659 = vsub.s32 %v656, %v658
  %v660 = vrot.slane %v652, %v659
  %v662 = vunpack.c.l.s4 1966171168
  %v663 = vunpack.c.0.s8 %v662
  %v664 = vlaneseq
  %v665 = vshrl.u32 %v664, 7
  %v666 = vsub.s32 %v663, %v665
  %v667 = vrot.slane %v653, %v666
  %v669 = vunpack.c.l.s4 1966171168
  %v670 = vunpack.c.0.s8 %v669
  %v671 = vlaneseq
  %v672 = vshrl.u32 %v671, 7
  %v673 = vsub.s32 %v670, %v672
  %v674 = vrot.slane %v646, %v673
  %v675 = vcombine.low %v660, %v667
  %v677 = vunpack.c.l.s4 1966171168
  %v678 = vunpack.c.0.s8 %v677
  %v679 = vlaneseq
  %v680 = vshrl.u32 %v679, 7
  %v681 = vsub.s32 %v678, %v680
  %v682 = vrot.slane %v675, %v681
  %v684 = vunpack.c.l.s4 1966171168
  %v685 = vunpack.c.0.s8 %v684
  %v686 = vlaneseq
  %v687 = vshrl.u32 %v686, 7
  %v688 = vsub.s32 %v685, %v687
  %v689 = vrot.slane %v674, %v688
  %v690 = vcombine.low %v682, %v689
  %v692 = vadd.f32 %v625, %v690
  %v693 = vmul.f32 %v692, 0.5
  %v694 = vtanh.pop %v693
  %v695 = vmul.f32 %v694, 0.5
  %v696 = vadd.f32 %v695, 0.5
  %v697 = vlaneseq
  %vm698 = vcmp.ge.s32.totalorder %v697, 0
  %vm699 = vcmp.lt.s32.totalorder %v697, 640
  %vm700 = vmand %vm698, %vm699
  %701 = vst.msk [vmem:[%s2] sm:$0x1f] %vm700, %v696
  // Predicated region
  $region10: #{gamut_projection.1} parent=0 // pred_check
    _
  $region11: #{gamut_projection.1} parent=0 // pred_check_branch
    %703 = sbr.rel (0) target = $region13
  $region12: #{gamut_projection.1} parent=0 // pred_region
    _
  $region13: #{gamut_projection.1} parent=0 // pred_fallthru
    _
  // Predicated region
  $region14: #{gamut_projection.1} parent=0 // pred_check
    _
  $region15: #{gamut_projection.1} parent=0 // pred_check_branch
    %705 = sbr.rel (0) target = $region17
  $region16: #{gamut_projection.1} parent=0 // pred_region
    _
  $region17: #{gamut_projection.1} parent=0 // pred_fallthru
    _

</llo_original>
